<compile_context>
chip_gen: v6e
topology: v6e:2x2x1
jax: 0.10.0
libtpu: 0.0.40
codegen_flags: <defaults>
</compile_context>

<pallas_src>
import jax
import jax.numpy as jnp
from jax.experimental import pallas as pl
from jax.experimental.pallas import tpu as pltpu

_LANE = 128
_SUBLANE = 8


def _round_up(n, m):
    return ((n + m - 1) // m) * m


def bssnn_kernel(x_ref, w1_ref, b1_ref, w2_ref, b2_ref, out_ref):
    # Layer 1: (tb, D) @ (D, hid_pad) on the MXU, f32 accumulate, ReLU on the VPU.
    # x arrives f32 from the caller; cast in-kernel (VPU has slack here).
    x = x_ref[...].astype(jnp.bfloat16)
    h = jnp.dot(x, w1_ref[...], preferred_element_type=jnp.float32) + b1_ref[...]
    h = jnp.maximum(h, 0.0)

    # Layer 2: contract the fused [+w2_joint ; -w2_marginal] row against h along
    # the hidden axis (trans-B dot, flash-attention style), producing a
    # lane-dense (1, tb) logit row: batch sits on lanes, so the bias add,
    # sigmoid (EUP) and the store only touch real logits -- no padded-slab work.
    # w2_ref is (8, hid_pad) bf16 with only row 0 non-zero (sublane-aligned LHS).
    logit8 = jax.lax.dot_general(
        w2_ref[...], h.astype(jnp.bfloat16),
        dimension_numbers=(((1,), (1,)), ((), ())),
        preferred_element_type=jnp.float32)
    logit = logit8[0:1, :] + b2_ref[0]
    out_ref[...] = jax.nn.sigmoid(logit).astype(out_ref.dtype)


def init_params(key, input_size, hidden_size):
    """PyTorch-style nn.Linear init; weights stored (in_features, out_features)."""
    ks = jax.random.split(key, 8)

    def lin(kw, kb, fan_in, fan_out):
        bound = 1.0 / jnp.sqrt(fan_in)
        w = jax.random.uniform(kw, (fan_in, fan_out), jnp.float32, -bound, bound)
        b = jax.random.uniform(kb, (1, fan_out), jnp.float32, -bound, bound)
        return w, b

    w1j, b1j = lin(ks[0], ks[1], input_size, hidden_size)
    w2j, b2j = lin(ks[2], ks[3], hidden_size, 1)
    w1m, b1m = lin(ks[4], ks[5], input_size, hidden_size)
    w2m, b2m = lin(ks[6], ks[7], hidden_size, 1)
    return dict(w1j=w1j, b1j=b1j, w2j=w2j, b2j=b2j,
                w1m=w1m, b1m=b1m, w2m=w2m, b2m=b2m)


def fuse_params(p, input_size, hidden_size):
    """Fold the two branches into one padded, lane-aligned weight set (done once).

    MXU operands (W1, W2) are pre-cast to bf16 so no per-grid-step casts are
    needed in the kernel; biases / accumulation stay f32.
    """
    hid = 2 * hidden_size
    # Round the fused hidden width to a lane multiple. (If hidden grows large,
    # rounding to 256 fills the v6e/v7x MXU better; memory-bound today.)
    hid_pad = _round_up(max(hid, _LANE), _LANE)

    w1 = jnp.zeros((input_size, hid_pad), jnp.float32)
    w1 = w1.at[:, :hidden_size].set(p["w1j"])
    w1 = w1.at[:, hidden_size:hid].set(p["w1m"])

    b1 = jnp.zeros((1, hid_pad), jnp.float32)
    b1 = b1.at[:, :hidden_size].set(p["b1j"])
    b1 = b1.at[:, hidden_size:hid].set(p["b1m"])

    # Fused second layer as a single row [w2_joint ; -w2_marginal], zero padded.
    # Stored as (8, hid_pad) with only row 0 meaningful so the in-kernel
    # dot_general has a sublane-aligned LHS; rows 1..7 cost nothing on the MXU.
    w2 = jnp.zeros((_SUBLANE, hid_pad), jnp.float32)
    w2 = w2.at[0, :hidden_size].set(p["w2j"][:, 0])
    w2 = w2.at[0, hidden_size:hid].set(-p["w2m"][:, 0])

    b2 = (p["b2j"] - p["b2m"]).reshape((1,)).astype(jnp.float32)  # SMEM scalar

    return dict(w1=w1.astype(jnp.bfloat16), b1=b1,
                w2=w2.astype(jnp.bfloat16), b2=b2)


def bssnn_forward(x, fused, *, tb=None):
    """x: (B, D) float32. fused: output of fuse_params. Returns (B, 1) float32."""
    B, D = x.shape
    hid_pad = fused["w1"].shape[1]

    # Batch tile: big enough to amortize ~0.35 us/step pipeline overhead; VMEM
    # stays ~3-4 MB at tb=2048 (x double-buffer + h intermediate), far below the
    # scoped limit on all generations. Clamp so the "parallel" grid axis keeps
    # >=2 steps when the batch allows it (v7x: 2 TensorCores), and keep tb a
    # multiple of 128 so the (1, tb) output row is lane-dense.
    if tb is None:
        tb = 2048
    tb = min(tb, _round_up(pl.cdiv(B, 2), _LANE))
    tb = _round_up(max(tb, _LANE), _LANE)

    # Pad batch with zero rows up to a multiple of tb: edge tiles then carry
    # finite logits (relu(b1) path) instead of junk, and are sliced off below.
    b_pad = _round_up(B, tb)
    if b_pad != B:
        x = jnp.pad(x, ((0, b_pad - B), (0, 0)))

    grid = (b_pad // tb,)

    out = pl.pallas_call(
        bssnn_kernel,
        out_shape=jax.ShapeDtypeStruct((1, b_pad), jnp.float32),
        grid=grid,
        in_specs=[
            pl.BlockSpec((tb, D), lambda i: (i, 0)),               # x: batch-tiled
            pl.BlockSpec((D, hid_pad), lambda i: (0, 0)),          # W1 (bf16), VMEM-resident
            pl.BlockSpec((1, hid_pad), lambda i: (0, 0)),          # b1 (f32), VMEM-resident
            pl.BlockSpec((_SUBLANE, hid_pad), lambda i: (0, 0)),   # W2 row (bf16), VMEM-resident
            pl.BlockSpec(memory_space=pltpu.MemorySpace.SMEM),     # b2 scalar in SMEM
        ],
        out_specs=pl.BlockSpec((1, tb), lambda i: (0, i)),          # lane-dense logit row
        compiler_params=pltpu.CompilerParams(
            dimension_semantics=("parallel",),
            vmem_limit_bytes=32 << 20,   # explicit headroom; actual use is a few MB
        ),
    )(x, fused["w1"], fused["b1"], fused["w2"], fused["b2"])

    return out[0, :B].reshape(B, 1)


def bssnn_reference(x, p):
    hj = jnp.maximum(x @ p["w1j"] + p["b1j"], 0.0)
    joint = hj @ p["w2j"] + p["b2j"]
    hm = jnp.maximum(x @ p["w1m"] + p["b1m"], 0.0)
    marginal = hm @ p["w2m"] + p["b2m"]
    return jax.nn.sigmoid(joint - marginal)


if __name__ == "__main__":
    key = jax.random.PRNGKey(0)
    k_x, k_p = jax.random.split(key)

    batch, input_size, hidden_size = 24, 16, 32
    x = jax.random.normal(k_x, (batch, input_size), jnp.float32)
    params = init_params(k_p, input_size, hidden_size)
    fused = fuse_params(params, input_size, hidden_size)

    # Single-tile path (tb gets clamped to 128 at this tiny batch).
    out = jax.block_until_ready(bssnn_forward(x, fused))
    ref = bssnn_reference(x, params)
    assert out.shape == (batch, 1), out.shape
    # bf16 MXU operands with f32 accumulation: tolerance loosened accordingly.
    assert jnp.allclose(out, ref, atol=2e-2, rtol=0.0), float(jnp.max(jnp.abs(out - ref)))

    # Multi-tile path: 3 grid steps with a zero-padded edge tile.
    k_x2 = jax.random.split(k_x)[0]
    x2 = jax.random.normal(k_x2, (300, input_size), jnp.float32)
    out2 = jax.block_until_ready(bssnn_forward(x2, fused, tb=128))
    ref2 = bssnn_reference(x2, params)
    assert out2.shape == (300, 1), out2.shape
    assert jnp.allclose(out2, ref2, atol=2e-2, rtol=0.0), float(jnp.max(jnp.abs(out2 - ref2)))

    print("KERNEL_OK")
</pallas_src>

<mosaic_0001>
module attributes {stable_mosaic.version = 11 : i64} {
  func.func @bssnn_kernel(%arg0: i32, %arg1: memref<128x16xf32, #tpu.memory_space<vmem>>, %arg2: memref<16x128xbf16, #tpu.memory_space<vmem>>, %arg3: memref<1x128xf32, #tpu.memory_space<vmem>>, %arg4: memref<8x128xbf16, #tpu.memory_space<vmem>>, %arg5: memref<1xf32, #tpu.memory_space<smem>>, %arg6: memref<1x128xf32, #tpu.memory_space<vmem>>) attributes {dimension_semantics = [#tpu.dimension_semantics<parallel>], iteration_bounds = array<i64: 1>, scalar_prefetch = 0 : i64, scratch_operands = 0 : i64, tpu.core_type = #tpu.core_type<tc>, window_params = [{transform_indices = @transform_0, window_bounds = array<i64: 128, 16>}, {pipeline_mode = #tpu.pipeline_mode<synchronous>, transform_indices = @transform_1, window_bounds = array<i64: 16, 128>}, {pipeline_mode = #tpu.pipeline_mode<synchronous>, transform_indices = @transform_2, window_bounds = array<i64: 1, 128>}, {pipeline_mode = #tpu.pipeline_mode<synchronous>, transform_indices = @transform_3, window_bounds = array<i64: 8, 128>}, {transform_indices = @transform_4, window_bounds = array<i64: 1>}, {transform_indices = @transform_5, window_bounds = array<i64: 1, 128>}]} {
    %c0 = arith.constant 0 : index
    %c0_0 = arith.constant 0 : index
    %0 = vector.load %arg1[%c0, %c0_0] : memref<128x16xf32, #tpu.memory_space<vmem>>, vector<128x16xf32>
    %1 = arith.truncf %0 : vector<128x16xf32> to vector<128x16xbf16>
    %c0_1 = arith.constant 0 : index
    %c0_2 = arith.constant 0 : index
    %2 = vector.load %arg2[%c0_1, %c0_2] : memref<16x128xbf16, #tpu.memory_space<vmem>>, vector<16x128xbf16>
    %cst = arith.constant dense<0.000000e+00> : vector<128x128xf32>
    %3 = tpu.matmul %1, %2, %cst {dimension_numbers = #tpu.dot_dimension_numbers<[1], [0], [0], [1], [0, 0, 1, 1], [], []>} : vector<128x16xbf16>, vector<16x128xbf16>, vector<128x128xf32> -> vector<128x128xf32>
    %c0_3 = arith.constant 0 : index
    %c0_4 = arith.constant 0 : index
    %4 = vector.load %arg3[%c0_3, %c0_4] : memref<1x128xf32, #tpu.memory_space<vmem>>, vector<1x128xf32>
    %5 = vector.broadcast %4 : vector<1x128xf32> to vector<128x128xf32>
    %6 = arith.addf %3, %5 : vector<128x128xf32>
    %cst_5 = arith.constant 0.000000e+00 : f32
    %7 = vector.broadcast %cst_5 : f32 to vector<128x128xf32>
    %8 = arith.maximumf %6, %7 : vector<128x128xf32>
    %c0_6 = arith.constant 0 : index
    %c0_7 = arith.constant 0 : index
    %9 = vector.load %arg4[%c0_6, %c0_7] : memref<8x128xbf16, #tpu.memory_space<vmem>>, vector<8x128xbf16>
    %10 = arith.truncf %8 : vector<128x128xf32> to vector<128x128xbf16>
    %cst_8 = arith.constant dense<0.000000e+00> : vector<8x128xf32>
    %11 = tpu.matmul %9, %10, %cst_8 {dimension_numbers = #tpu.dot_dimension_numbers<[1], [1], [0], [0], [0, 0, 1, 0], [], []>} : vector<8x128xbf16>, vector<128x128xbf16>, vector<8x128xf32> -> vector<8x128xf32>
    %12 = vector.extract_strided_slice %11 {offsets = [0, 0], sizes = [1, 128], strides = [1, 1]} : vector<8x128xf32> to vector<1x128xf32>
    %c0_9 = arith.constant 0 : index
    %13 = memref.load %arg5[%c0_9] : memref<1xf32, #tpu.memory_space<smem>>
    %14 = vector.broadcast %13 : f32 to vector<1x128xf32>
    %15 = arith.addf %12, %14 : vector<1x128xf32>
    %16 = arith.negf %15 : vector<1x128xf32>
    %17 = math.exp %16 : vector<1x128xf32>
    %cst_10 = arith.constant 1.000000e+00 : f32
    %18 = vector.broadcast %cst_10 : f32 to vector<1x128xf32>
    %19 = arith.addf %18, %17 : vector<1x128xf32>
    %20 = arith.divf %18, %19 : vector<1x128xf32>
    %c0_11 = arith.constant 0 : index
    %c0_12 = arith.constant 0 : index
    %21 = vector.load %arg6[%c0_11, %c0_12] : memref<1x128xf32, #tpu.memory_space<vmem>>, vector<1x128xf32>
    tpu.vector_store %arg6[%c0_11, %c0_12], %20 {strides = array<i32>} : memref<1x128xf32, #tpu.memory_space<vmem>>, vector<1x128xf32>,
    return
  }
  func.func @transform_0(%arg0: i32) -> (i32, i32) {
    %c0_i32 = arith.constant 0 : i32
    %c0_i32_0 = arith.constant 0 : i32
    return %arg0, %c0_i32 : i32, i32
  }
  func.func @transform_1(%arg0: i32) -> (i32, i32) {
    %c0_i32 = arith.constant 0 : i32
    %c0_i32_0 = arith.constant 0 : i32
    %c0_i32_1 = arith.constant 0 : i32
    return %c0_i32, %c0_i32_0 : i32, i32
  }
  func.func @transform_2(%arg0: i32) -> (i32, i32) {
    %c0_i32 = arith.constant 0 : i32
    %c0_i32_0 = arith.constant 0 : i32
    %c0_i32_1 = arith.constant 0 : i32
    return %c0_i32, %c0_i32_0 : i32, i32
  }
  func.func @transform_3(%arg0: i32) -> (i32, i32) {
    %c0_i32 = arith.constant 0 : i32
    %c0_i32_0 = arith.constant 0 : i32
    %c0_i32_1 = arith.constant 0 : i32
    return %c0_i32, %c0_i32_0 : i32, i32
  }
  func.func @transform_4(%arg0: i32) -> i32 {
    %c0_i32 = arith.constant 0 : i32
    %c0_i32_0 = arith.constant 0 : i32
    return %c0_i32 : i32
  }
  func.func @transform_5(%arg0: i32) -> (i32, i32) {
    %c0_i32 = arith.constant 0 : i32
    %c0_i32_0 = arith.constant 0 : i32
    return %c0_i32, %arg0 : i32, i32
  }
}

</mosaic_0001>

<llo_original>
// kernel: tpu_custom_call.1
$region0: #{tpu_custom_call.1}
  #allocation0 [shape = 'u32[]', space=smem, size = 0x4, offset = 0x4, fixed_abs, tag = 'smem constant byte address 0x4 - core index']
  #allocation1 [shape = 'u32[144,128]{1,0:T(1,128)}', space=vmem, size = 0x12000, scoped, tag = 'internal scratch']
  #allocation2 [shape = 'f32[1]{0:T(128)S(6)}', space=smem, size = 0x200, scoped, tag = 'scoped memory for tpu_custom_call.1']
  %s0 = inlined_call_operand.vmem [shape: f32[128,16], index: 0, kind: input, shape index: {}]
  %s1 = inlined_call_operand.vmem [shape: bf16[16,128], index: 1, kind: input, shape index: {}]
  %s2 = inlined_call_operand.vmem [shape: f32[1,128], index: 2, kind: input, shape index: {}]
  %s3 = inlined_call_operand.vmem [shape: bf16[8,128], index: 3, kind: input, shape index: {}]
  %s4 = inlined_call_operand.<no memory space> [shape: f32[1], index: 4, kind: input, shape index: {}]
  %s5 = inlined_call_operand.hbm [shape: f32[1,128], index: 5, kind: output, shape index: {}]
  %s6 = sld [smem:[#allocation0]]
  $region30: #{tpu_custom_call.1} parent=0
    _
  %s8 = ssub.s32 1, %s6
  %s9 = scalar_select 0, %s8, %s6
  %10 = sst [smem:[#allocation2]] %s4
  $region1: #{tpu_custom_call.1} parent=0
    #allocation3 [shape = 'u8[512]{0}', space=vmem, size = 0x400, scoped, tag = 'output window, operand 0, single buffered']
    #allocation4 [shape = 's32[1]{0}', space=sflag, size = 0x4, scoped, tag = 'scoped memory for tpu_custom_call.1']
    %11 = vsyncpa [#allocation4], 0
    // Predicated region
    $region2: #{tpu_custom_call.1} parent=1 // pred_check
      _
    $region3: #{tpu_custom_call.1} parent=1 // pred_check_branch
      %13 = sbr.rel (0) target = $region5
    $region4: #{tpu_custom_call.1} parent=1 // pred_region
      _
    $region5: #{tpu_custom_call.1} parent=1 // pred_fallthru
      _
    // Predicated region
    $region6: #{tpu_custom_call.1} parent=1 // pred_check
      _
    $region7: #{tpu_custom_call.1} parent=1 // pred_check_branch
      %15 = sbr.rel (0) target = $region9
    $region8: #{tpu_custom_call.1} parent=1 // pred_region
      _
    $region9: #{tpu_custom_call.1} parent=1 // pred_fallthru
      _
    // Predicated region
    $region10: #{tpu_custom_call.1} parent=1 // pred_check
      _
    $region11: #{tpu_custom_call.1} parent=1 // pred_check_branch
      %17 = sbr.rel (0) target = $region13
    $region12: #{tpu_custom_call.1} parent=1 // pred_region
      _
    $region13: #{tpu_custom_call.1} parent=1 // pred_fallthru
      _
    // Predicated region
    $region14: #{tpu_custom_call.1} parent=1 // pred_check
      _
    $region15: #{tpu_custom_call.1} parent=1 // pred_check_branch
      %19 = sbr.rel (0) target = $region17
    $region16: #{tpu_custom_call.1} parent=1 // pred_region
      _
    $region17: #{tpu_custom_call.1} parent=1 // pred_fallthru
      _
    // Predicated region
    $region18: #{tpu_custom_call.1} parent=1 // pred_check
      _
    $region19: #{tpu_custom_call.1} parent=1 // pred_check_branch
      %21 = sbr.rel (0) target = $region21
    $region20: #{tpu_custom_call.1} parent=1 // pred_region
      _
    $region21: #{tpu_custom_call.1} parent=1 // pred_fallthru
      _
    %v23 = vld [vmem:[%s0] sm:$0xff]
    %v24 = vld [vmem:[%s0 + $0x8] sm:$0xff]
    %v25 = vld [vmem:[%s0 + $0x10] sm:$0xff]
    %v26 = vld [vmem:[%s0 + $0x18] sm:$0xff]
    %v27 = vld [vmem:[%s0 + $0x20] sm:$0xff]
    %v28 = vld [vmem:[%s0 + $0x28] sm:$0xff]
    %v29 = vld [vmem:[%s0 + $0x30] sm:$0xff]
    %v30 = vld [vmem:[%s0 + $0x38] sm:$0xff]
    %v31 = vld [vmem:[%s0 + $0x40] sm:$0xff]
    %v32 = vld [vmem:[%s0 + $0x48] sm:$0xff]
    %v33 = vld [vmem:[%s0 + $0x50] sm:$0xff]
    %v34 = vld [vmem:[%s0 + $0x58] sm:$0xff]
    %v35 = vld [vmem:[%s0 + $0x60] sm:$0xff]
    %v36 = vld [vmem:[%s0 + $0x68] sm:$0xff]
    %v37 = vld [vmem:[%s0 + $0x70] sm:$0xff]
    %v38 = vld [vmem:[%s0 + $0x78] sm:$0xff]
    %v39 = vpack.c.bf16 %v24, %v23
    %v40 = vpack.c.bf16 %v26, %v25
    %v41 = vpack.c.bf16 %v28, %v27
    %v42 = vpack.c.bf16 %v30, %v29
    %v43 = vpack.c.bf16 %v32, %v31
    %v44 = vpack.c.bf16 %v34, %v33
    %v45 = vpack.c.bf16 %v36, %v35
    %v46 = vpack.c.bf16 %v38, %v37
    %v47 = vld [vmem:[%s1] sm:$0xf]
    %v48 = vld [vmem:[%s1 + $0x4] sm:$0xf]
    %v49 = vld [vmem:[%s2] sm:$0x1]
    %v51 = vlaneseq
    %v52 = vshrl.u32 %v51, 7
    %v53 = vsub.s32 0, %v52
    %v54 = vrot.slane %v49, %v53
    %v58 = vunpack.c.l.b16 %v47
    %v59 = vunpack.c.l.b16 %v48
    %v60 = vpack.c.b16 %v59, %v58
    %vm62 = vcmask 130048
    %v64 = vsel %vm62, %v39, 0
    %v67 = vsel %vm62, %v40, 0
    %v70 = vsel %vm62, %v41, 0
    %v73 = vsel %vm62, %v42, 0
    %v76 = vsel %vm62, %v43, 0
    %v79 = vsel %vm62, %v44, 0
    %v82 = vsel %vm62, %v45, 0
    %v85 = vsel %vm62, %v46, 0
    %87 = vmatprep.subr.bf16.mxu0 0
    %88 = vmatpush1.bf16.msra.mxu0 0
    %89 = vmatprep.subr.bf16.mxu0 0
    %90 = vmatpush1.bf16.msra.mxu0 0
    %91 = vmatprep.subr.bf16.mxu0 0
    %92 = vmatpush1.bf16.msra.mxu0 0
    %93 = vmatprep.subr.bf16.mxu0 0
    %94 = vmatpush1.bf16.msra.mxu0 0
    %95 = vmatprep.subr.bf16.mxu0 0
    %96 = vmatpush1.bf16.msra.mxu0 0
    %97 = vmatprep.subr.bf16.mxu0 0
    %98 = vmatpush1.bf16.msra.mxu0 0
    %99 = vmatprep.subr.bf16.mxu0 0
    %100 = vmatpush1.bf16.msra.mxu0 0
    %101 = vmatprep.subr.bf16.mxu0 0
    %102 = vmatpush1.bf16.msra.mxu0 %v60
    %103 = vmatprep.subr.bf16.mxu0 0
    %104 = vmatpush2.bf16.msra.mxu0 0
    %105 = vmatprep.subr.bf16.mxu0 0
    %106 = vmatpush2.bf16.msra.mxu0 0
    %107 = vmatprep.subr.bf16.mxu0 0
    %108 = vmatpush2.bf16.msra.mxu0 0
    %109 = vmatprep.subr.bf16.mxu0 0
    %110 = vmatpush2.bf16.msra.mxu0 0
    %111 = vmatprep.subr.bf16.mxu0 0
    %112 = vmatpush2.bf16.msra.mxu0 0
    %113 = vmatprep.subr.bf16.mxu0 0
    %114 = vmatpush2.bf16.msra.mxu0 0
    %115 = vmatprep.subr.bf16.mxu0 0
    %116 = vmatpush2.bf16.msra.mxu0 0
    %117 = vmatprep.subr.bf16.mxu0 0
    %118 = vmatpush2.bf16.msra.mxu0 0
    %119 = vmatprep.mubr.bf16.mxu0 0
    %120 = vmatmul.mubr.bf16.gmra.mxu0 %v64
    %v121 = vpop.f32.mrf.mxu0
    %v122 = vadd.f32 %v54, %v121
    %v123 = vpop.f32.mrf.mxu0
    %v124 = vpop.f32.mrf.mxu0
    %v125 = vadd.f32 %v54, %v124
    %v126 = vpop.f32.mrf.mxu0
    %127 = vmatprep.mubr.bf16.mxu0 0
    %128 = vmatmul.mubr.bf16.gmra.mxu0 %v67
    %v129 = vpop.f32.mrf.mxu0
    %v130 = vadd.f32 %v54, %v129
    %v131 = vpop.f32.mrf.mxu0
    %v132 = vpop.f32.mrf.mxu0
    %v133 = vadd.f32 %v54, %v132
    %v134 = vpop.f32.mrf.mxu0
    %135 = vmatprep.mubr.bf16.mxu0 0
    %136 = vmatmul.mubr.bf16.gmra.mxu0 %v70
    %v137 = vpop.f32.mrf.mxu0
    %v138 = vadd.f32 %v54, %v137
    %v139 = vpop.f32.mrf.mxu0
    %v140 = vpop.f32.mrf.mxu0
    %v141 = vadd.f32 %v54, %v140
    %v142 = vpop.f32.mrf.mxu0
    %143 = vmatprep.mubr.bf16.mxu0 0
    %144 = vmatmul.mubr.bf16.gmra.mxu0 %v73
    %v145 = vpop.f32.mrf.mxu0
    %v146 = vadd.f32 %v54, %v145
    %v147 = vpop.f32.mrf.mxu0
    %v148 = vpop.f32.mrf.mxu0
    %v149 = vadd.f32 %v54, %v148
    %v150 = vpop.f32.mrf.mxu0
    %151 = vmatprep.mubr.bf16.mxu0 0
    %152 = vmatmul.mubr.bf16.gmra.mxu0 %v76
    %v153 = vpop.f32.mrf.mxu0
    %v154 = vadd.f32 %v54, %v153
    %v155 = vpop.f32.mrf.mxu0
    %v156 = vpop.f32.mrf.mxu0
    %v157 = vadd.f32 %v54, %v156
    %v158 = vpop.f32.mrf.mxu0
    %159 = vmatprep.mubr.bf16.mxu0 0
    %160 = vmatmul.mubr.bf16.gmra.mxu0 %v79
    %v161 = vpop.f32.mrf.mxu0
    %v162 = vadd.f32 %v54, %v161
    %v163 = vpop.f32.mrf.mxu0
    %v164 = vpop.f32.mrf.mxu0
    %v165 = vadd.f32 %v54, %v164
    %v166 = vpop.f32.mrf.mxu0
    %167 = vmatprep.mubr.bf16.mxu0 0
    %168 = vmatmul.mubr.bf16.gmra.mxu0 %v82
    %v169 = vpop.f32.mrf.mxu0
    %v170 = vadd.f32 %v54, %v169
    %v171 = vpop.f32.mrf.mxu0
    %v172 = vpop.f32.mrf.mxu0
    %v173 = vadd.f32 %v54, %v172
    %v174 = vpop.f32.mrf.mxu0
    %175 = vmatprep.mubr.bf16.mxu0 0
    %176 = vmatmul.mubr.bf16.gmra.mxu0 %v85
    %v177 = vpop.f32.mrf.mxu0
    %v178 = vadd.f32 %v54, %v177
    %v179 = vpop.f32.mrf.mxu0
    %v180 = vpop.f32.mrf.mxu0
    %v181 = vadd.f32 %v54, %v180
    %v182 = vpop.f32.mrf.mxu0
    %183 = vdwg.mxu0
    %v184 = vmax.f32 %v122, 0.0
    %v185 = vmax.f32 %v125, 0.0
    %v186 = vmax.f32 %v130, 0.0
    %v187 = vmax.f32 %v133, 0.0
    %v188 = vmax.f32 %v138, 0.0
    %v189 = vmax.f32 %v141, 0.0
    %v190 = vmax.f32 %v146, 0.0
    %v191 = vmax.f32 %v149, 0.0
    %v192 = vmax.f32 %v154, 0.0
    %v193 = vmax.f32 %v157, 0.0
    %v194 = vmax.f32 %v162, 0.0
    %v195 = vmax.f32 %v165, 0.0
    %v196 = vmax.f32 %v170, 0.0
    %v197 = vmax.f32 %v173, 0.0
    %v198 = vmax.f32 %v178, 0.0
    %v199 = vmax.f32 %v181, 0.0
    %v200 = vld [vmem:[%s3] sm:$0xf]
    %v201 = vpack.c.bf16 %v185, %v184
    %v202 = vpack.c.bf16 %v187, %v186
    %v203 = vpack.c.bf16 %v189, %v188
    %v204 = vpack.c.bf16 %v191, %v190
    %v205 = vpack.c.bf16 %v193, %v192
    %v206 = vpack.c.bf16 %v195, %v194
    %v207 = vpack.c.bf16 %v197, %v196
    %v208 = vpack.c.bf16 %v199, %v198
    %209 = vmatprep.subr.bf16.mxu0 0
    %210 = vmatpush1.bf16.xpose.msra.mxu0 %v208
    %211 = vmatprep.subr.bf16.mxu0 0
    %212 = vmatpush1.bf16.xpose.msra.mxu0 %v207
    %213 = vmatprep.subr.bf16.mxu0 0
    %214 = vmatpush1.bf16.xpose.msra.mxu0 %v206
    %215 = vmatprep.subr.bf16.mxu0 0
    %216 = vmatpush1.bf16.xpose.msra.mxu0 %v205
    %217 = vmatprep.subr.bf16.mxu0 0
    %218 = vmatpush1.bf16.xpose.msra.mxu0 %v204
    %219 = vmatprep.subr.bf16.mxu0 0
    %220 = vmatpush1.bf16.xpose.msra.mxu0 %v203
    %221 = vmatprep.subr.bf16.mxu0 0
    %222 = vmatpush1.bf16.xpose.msra.mxu0 %v202
    %223 = vmatprep.subr.bf16.mxu0 0
    %224 = vmatpush1.bf16.xpose.msra.mxu0 %v201
    %225 = vmatprep.subr.bf16.mxu0 0
    %226 = vmatpush2.bf16.xpose.msra.mxu0 0
    %227 = vmatprep.subr.bf16.mxu0 0
    %228 = vmatpush2.bf16.xpose.msra.mxu0 0
    %229 = vmatprep.subr.bf16.mxu0 0
    %230 = vmatpush2.bf16.xpose.msra.mxu0 0
    %231 = vmatprep.subr.bf16.mxu0 0
    %232 = vmatpush2.bf16.xpose.msra.mxu0 0
    %233 = vmatprep.subr.bf16.mxu0 0
    %234 = vmatpush2.bf16.xpose.msra.mxu0 0
    %235 = vmatprep.subr.bf16.mxu0 0
    %236 = vmatpush2.bf16.xpose.msra.mxu0 0
    %237 = vmatprep.subr.bf16.mxu0 0
    %238 = vmatpush2.bf16.xpose.msra.mxu0 0
    %239 = vmatprep.subr.bf16.mxu0 0
    %240 = vmatpush2.bf16.xpose.msra.mxu0 0
    %241 = vmatprep.mubr.bf16.mxu0 0
    %242 = vmatmul.mubr.bf16.gmra.mxu0 %v200
    %v243 = vpop.f32.mrf.mxu0
    %v244 = vadd.f32 0.0, %v243
    %v245 = vpop.f32.mrf.mxu0
    %v246 = vpop.f32.mrf.mxu0
    %v247 = vpop.f32.mrf.mxu0
    %248 = vdwg.mxu0
    %s249 = sld [smem:[#allocation2]]
    %v250 = vstv %s249
    %v251 = vadd.f32 %v244, %v250
    %v252 = vxor.u32 %v251, 2147483648
    %v253 = vmul.f32 %v252, 1.442695
    %v254 = vpow.pop %v253
    %v255 = vadd.f32 %v254, 1.0
    %v256 = vrcp.pop %v255
    %v257 = vmul.f32 1.0, %v256
    %258 = vst [vmem:[#allocation3] sm:$0x1] %v257
    // Predicated region
    $region22: #{tpu_custom_call.1} parent=1 // pred_check
      _
    $region23: #{tpu_custom_call.1} parent=1 // pred_check_branch
      %260 = sbr.rel (0) target = $region25
    $region24: #{tpu_custom_call.1} parent=1 // pred_region
      %s262 = ssub.s32 16, 16
      %263 = vsyncadd [#allocation4], %s262
      %s265 = sshll.u32 [#allocation3], 4
      %s266 = int_to_ptr.vmem [resolvable:$true] %s265
      %268 = dma.vmem_to_hbm [thread:$0]  %s266, 16, %s5, [#allocation4]
    $region25: #{tpu_custom_call.1} parent=1 // pred_fallthru
      _
    // Predicated region
    $region26: #{tpu_custom_call.1} parent=1 // pred_check
      _
    $region27: #{tpu_custom_call.1} parent=1 // pred_check_branch
      %270 = sbr.rel (0) target = $region29
    $region28: #{tpu_custom_call.1} parent=1 // pred_region
      %271 = dma.done [#allocation4], 16
    $region29: #{tpu_custom_call.1} parent=1 // pred_fallthru
      _
    %272 = vsyncpa [#allocation4], 1

</llo_original>
